<compile_context>
chip_gen: v6e
topology: v6e:2x2x1
jax: 0.10.0
libtpu: 0.0.40
codegen_flags: <defaults>
</compile_context>

<pallas_src>
import jax
import jax.numpy as jnp
from jax import lax
from jax.experimental import pallas as pl
from jax.experimental.pallas import tpu as pltpu


HIDDEN = 32    # MLP width
NFEAT = 11     # number of spatial features
KPAD = 16      # K padded to 16 for the MXU matmul (row 11 = bias "ones" row)

_TARGET_TILE = 4096   # large-R row tile (multiple of 128)


def _round_up(x, m):
    return ((x + m - 1) // m) * m


def _pick_grid(r):
    """Return (row_tile, padded_rows).

    Tile is a multiple of 128. For R_pad >= 256 the grid step count is forced
    even (>=2) so both v7x TensorCores get balanced work; for large R the tile
    grows to ~4K rows so the ~0.35us per-step pipeline overhead is amortized.
    """
    r128 = _round_up(max(r, 1), 128)
    if r128 <= 128:
        return r128, r128                      # tiny: one step
    steps = max(2, -(-r128 // _TARGET_TILE))   # ceil-div to target tile
    steps = _round_up(steps, 2)                # even -> megacore balance
    tile = _round_up(-(-r128 // steps), 128)
    return tile, steps * tile


def _leaky(x):
    # LeakyReLU(0.1): max(x, 0.1*x)  (exact for slope in (0,1))
    return jnp.maximum(x, 0.1 * x)


def boxes_su_kernel(scale_ref, so_ref, w1t_ref, w2_ref, b2_ref,
                    out_ref, feat_ref):
    # so_ref  : [8, TR]  rows = sx1,sy1,sx2,sy2,ox1,oy1,ox2,oy2   (lane-dense)
    # scale_ref: [8, 1]  rows 0..3 = 1/w,1/h,1/w,1/h ; row 4 = 1/(w*h)
    tr = so_ref.shape[1]

    scale4 = scale_ref[0:4, :]          # (4,1)
    inv_area = scale_ref[4:5, :]        # (1,1)

    s_lo = so_ref[0:2, :]               # (2,TR)  sx1, sy1
    s_hi = so_ref[2:4, :]               # (2,TR)  sx2, sy2

    # ---- box features f1..f5 (rows 6..10), 4- and 1-row slabs --------------
    feat_ref[6:10, :] = so_ref[0:4, :] * scale4
    ex_wh = s_hi - s_lo + 1.0                                   # (2,TR)
    feat_ref[10:11, :] = ex_wh[0:1, :] * ex_wh[1:2, :] * inv_area

    # ---- union box + pair deltas (rows 0..5), 2-row slabs -------------------
    u_lo = jnp.minimum(s_lo, so_ref[4:6, :])                    # (2,TR)
    u_hi = jnp.maximum(s_hi, so_ref[6:8, :])                    # (2,TR)
    u_wh = u_hi - u_lo + 1.0                                    # (2,TR)

    ex_c = s_lo + 0.5 * ex_wh                                   # (2,TR)
    u_c = u_lo + 0.5 * u_wh                                     # (2,TR)

    inv_ex = 1.0 / ex_wh                                        # (2,TR)
    feat_ref[0:2, :] = (u_c - ex_c) * inv_ex                    # delta_1 dx,dy
    feat_ref[2:4, :] = jnp.log(u_wh * inv_ex)                   # delta_1 dw,dh
    feat_ref[4:6, :] = (ex_c - u_c) * (1.0 / u_wh)              # delta_2 dx,dy

    # ---- bias "ones" row + zero K-padding (re-written every step) ----------
    feat_ref[NFEAT:NFEAT + 1, :] = jnp.ones((1, tr), jnp.float32)
    feat_ref[NFEAT + 1:KPAD, :] = jnp.zeros((KPAD - NFEAT - 1, tr), jnp.float32)

    feats_t = feat_ref[...]                                     # [16, TR]

    # Layer 1 on the MXU (b1 folded via the ones row): [32,16] @ [16,TR]
    h1_t = jnp.dot(w1t_ref[...], feats_t,
                   preferred_element_type=jnp.float32)          # [32, TR]
    h1_t = _leaky(h1_t)

    # Layer 2: contract axis 0 of both operands -> MXU emits [TR, 32] directly
    # (no explicit XLU transpose in the epilogue).
    h2 = lax.dot_general(h1_t, w2_ref[...],
                         dimension_numbers=(((0,), (0,)), ((), ())),
                         preferred_element_type=jnp.float32)    # [TR, 32]
    h2 = _leaky(h2 + b2_ref[...])
    out_ref[...] = h2.astype(out_ref.dtype)


@jax.jit
def boxes_su_encode(boxes, rel_inds, width, height, w1, b1, w2, b2):
    R = rel_inds.shape[0]
    TR, R_pad = _pick_grid(R)
    grid = R_pad // TR

    # glue: gather from the transposed (tiny) boxes table so the [8, R_pad]
    # lane-dense kernel input is produced directly.
    boxes_t = boxes.astype(jnp.float32).T                      # [4, N] (tiny)
    s_t = jnp.take(boxes_t, rel_inds[:, 0], axis=1)            # [4, R]
    o_t = jnp.take(boxes_t, rel_inds[:, 1], axis=1)            # [4, R]
    so_t = jnp.concatenate([s_t, o_t], axis=0)                 # [8, R]
    so_t = jnp.pad(so_t, ((0, 0), (0, R_pad - R)))             # zero cols safe

    w_f = jnp.asarray(width, jnp.float32)
    h_f = jnp.asarray(height, jnp.float32)
    scale_col = jnp.concatenate(
        [jnp.stack([1.0 / w_f, 1.0 / h_f, 1.0 / w_f, 1.0 / h_f,
                    1.0 / (w_f * h_f)]),
         jnp.zeros((3,), jnp.float32)]).reshape(8, 1)

    # Transposed / K-padded weights; b1 folded into column NFEAT (ones row).
    w1t = jnp.zeros((HIDDEN, KPAD), jnp.float32)
    w1t = w1t.at[:, :NFEAT].set(w1.astype(jnp.float32).T)
    w1t = w1t.at[:, NFEAT].set(b1.astype(jnp.float32))
    w2f = w2.astype(jnp.float32)
    b2r = b2.astype(jnp.float32).reshape(1, HIDDEN)

    flops = R_pad * (40 + 2 * KPAD * HIDDEN + 2 * HIDDEN * HIDDEN + 4 * HIDDEN)
    bytes_acc = (R_pad * (8 + HIDDEN) * 4
                 + (HIDDEN * KPAD + HIDDEN * HIDDEN + HIDDEN + 8) * 4)
    cost = pl.CostEstimate(flops=flops, transcendentals=R_pad * 6,
                           bytes_accessed=bytes_acc)

    out = pl.pallas_call(
        boxes_su_kernel,
        out_shape=jax.ShapeDtypeStruct((R_pad, HIDDEN), jnp.float32),
        grid_spec=pltpu.PrefetchScalarGridSpec(
            num_scalar_prefetch=0,
            grid=(grid,),
            in_specs=[
                pl.BlockSpec((8, 1), lambda i: (0, 0)),            # scale col
                pl.BlockSpec((8, TR), lambda i: (0, i)),           # boxes^T
                pl.BlockSpec((HIDDEN, KPAD), lambda i: (0, 0)),    # W1^T (+b1)
                pl.BlockSpec((HIDDEN, HIDDEN), lambda i: (0, 0)),  # W2
                pl.BlockSpec((1, HIDDEN), lambda i: (0, 0)),       # b2 row
            ],
            out_specs=pl.BlockSpec((TR, HIDDEN), lambda i: (i, 0)),
            scratch_shapes=[pltpu.VMEM((KPAD, TR), jnp.float32)],
        ),
        compiler_params=pltpu.CompilerParams(
            dimension_semantics=("parallel",)),
        cost_estimate=cost,
    )(scale_col, so_t, w1t, w2f, b2r)

    return out[:R]


# ---------------- pure-JAX reference (for correctness check) ----------------
def _reference(boxes, rel_inds, width, height, w1, b1, w2, b2):
    s = boxes[rel_inds[:, 0]].astype(jnp.float32)
    o = boxes[rel_inds[:, 1]].astype(jnp.float32)
    u = jnp.concatenate([jnp.minimum(s[:, 0:2], o[:, 0:2]),
                         jnp.maximum(s[:, 2:4], o[:, 2:4])], axis=1)

    def binv(b, g):
        ew = b[:, 2] - b[:, 0] + 1.0
        eh = b[:, 3] - b[:, 1] + 1.0
        ecx = b[:, 0] + 0.5 * ew
        ecy = b[:, 1] + 0.5 * eh
        gw = g[:, 2] - g[:, 0] + 1.0
        gh = g[:, 3] - g[:, 1] + 1.0
        gcx = g[:, 0] + 0.5 * gw
        gcy = g[:, 1] + 0.5 * gh
        return jnp.stack([(gcx - ecx) / ew, (gcy - ecy) / eh,
                          jnp.log(gw / ew), jnp.log(gh / eh)], -1)

    d1 = binv(s, u)
    d2 = binv(u, s)
    box_f = jnp.stack([s[:, 0] / width, s[:, 1] / height,
                       s[:, 2] / width, s[:, 3] / height,
                       (s[:, 2] - s[:, 0] + 1) * (s[:, 3] - s[:, 1] + 1)
                       / (width * height)], -1)
    feat = jnp.concatenate([d1, d2[:, :2], box_f], -1)      # [R, 11]

    def lrelu(x):
        return jnp.where(x >= 0, x, 0.1 * x)

    h = lrelu(feat @ w1 + b1)
    return lrelu(h @ w2 + b2)


if __name__ == "__main__":
    key = jax.random.PRNGKey(0)
    (k_box, k_idx, k_idx2, k_idx3,
     k_w1, k_b1, k_w2, k_b2) = jax.random.split(key, 8)

    N = 10                     # number of boxes
    width, height = 64.0, 48.0

    # deterministic boxes with x1<x2, y1<y2
    xy = jax.random.uniform(k_box, (N, 2, 2), minval=0.0, maxval=width - 1.0)
    lo = jnp.min(xy, axis=1)
    hi = jnp.max(xy, axis=1) + 1.0
    boxes = jnp.concatenate([lo, hi], axis=1).astype(jnp.float32)   # [N, 4]

    # deterministic parameters (Linear(11,32), Linear(32,32))
    w1 = jax.random.normal(k_w1, (NFEAT, HIDDEN), jnp.float32) * 0.1
    b1 = jax.random.normal(k_b1, (HIDDEN,), jnp.float32) * 0.01
    w2 = jax.random.normal(k_w2, (HIDDEN, HIDDEN), jnp.float32) * 0.1
    b2 = jax.random.normal(k_b2, (HIDDEN,), jnp.float32) * 0.01

    # single-tile tiny case, 2-step mid case, 2-step case with heavy padding
    for R, kk in ((16, k_idx), (257, k_idx3), (1300, k_idx2)):
        rel_inds = jax.random.randint(kk, (R, 2), 0, N, dtype=jnp.int32)
        out = boxes_su_encode(boxes, rel_inds, width, height, w1, b1, w2, b2)
        out = jax.block_until_ready(out)
        ref = _reference(boxes, rel_inds, width, height, w1, b1, w2, b2)
        assert out.shape == (R, HIDDEN)
        assert jnp.allclose(out, ref, atol=2e-3, rtol=2e-3), \
            f"mismatch vs reference at R={R}"

    print("KERNEL_OK")
</pallas_src>

<mosaic_0001>
module attributes {stable_mosaic.version = 11 : i64} {
  func.func @boxes_su_kernel(%arg0: i32, %arg1: memref<8x1xf32, #tpu.memory_space<vmem>>, %arg2: memref<8x128xf32, #tpu.memory_space<vmem>>, %arg3: memref<32x16xf32, #tpu.memory_space<vmem>>, %arg4: memref<32x32xf32, #tpu.memory_space<vmem>>, %arg5: memref<1x32xf32, #tpu.memory_space<vmem>>, %arg6: memref<128x32xf32, #tpu.memory_space<vmem>>, %arg7: memref<16x128xf32, #tpu.memory_space<vmem>>) attributes {dimension_semantics = [#tpu.dimension_semantics<parallel>], iteration_bounds = array<i64: 1>, scalar_prefetch = 0 : i64, scratch_operands = 1 : i64, tpu.core_type = #tpu.core_type<tc>, window_params = [{pipeline_mode = #tpu.pipeline_mode<synchronous>, transform_indices = @transform_0, window_bounds = array<i64: 8, 1>}, {transform_indices = @transform_1, window_bounds = array<i64: 8, 128>}, {pipeline_mode = #tpu.pipeline_mode<synchronous>, transform_indices = @transform_2, window_bounds = array<i64: 32, 16>}, {pipeline_mode = #tpu.pipeline_mode<synchronous>, transform_indices = @transform_3, window_bounds = array<i64: 32, 32>}, {pipeline_mode = #tpu.pipeline_mode<synchronous>, transform_indices = @transform_4, window_bounds = array<i64: 1, 32>}, {transform_indices = @transform_5, window_bounds = array<i64: 128, 32>}]} {
    %c0 = arith.constant 0 : index
    %c0_0 = arith.constant 0 : index
    %0 = vector.load %arg1[%c0, %c0_0] : memref<8x1xf32, #tpu.memory_space<vmem>>, vector<4x1xf32>
    %c4 = arith.constant 4 : index
    %c0_1 = arith.constant 0 : index
    %1 = vector.load %arg1[%c4, %c0_1] : memref<8x1xf32, #tpu.memory_space<vmem>>, vector<1x1xf32>
    %c0_2 = arith.constant 0 : index
    %c0_3 = arith.constant 0 : index
    %2 = vector.load %arg2[%c0_2, %c0_3] : memref<8x128xf32, #tpu.memory_space<vmem>>, vector<2x128xf32>
    %c2 = arith.constant 2 : index
    %c0_4 = arith.constant 0 : index
    %3 = vector.load %arg2[%c2, %c0_4] : memref<8x128xf32, #tpu.memory_space<vmem>>, vector<2x128xf32>
    %c0_5 = arith.constant 0 : index
    %c0_6 = arith.constant 0 : index
    %4 = vector.load %arg2[%c0_5, %c0_6] : memref<8x128xf32, #tpu.memory_space<vmem>>, vector<4x128xf32>
    %5 = vector.broadcast %0 : vector<4x1xf32> to vector<4x128xf32>
    %6 = arith.mulf %4, %5 : vector<4x128xf32>
    %c6 = arith.constant 6 : index
    %c0_7 = arith.constant 0 : index
    %7 = vector.load %arg7[%c6, %c0_7] : memref<16x128xf32, #tpu.memory_space<vmem>>, vector<4x128xf32>
    tpu.vector_store %arg7[%c6, %c0_7], %6 {strides = array<i32>} : memref<16x128xf32, #tpu.memory_space<vmem>>, vector<4x128xf32>,
    %8 = arith.subf %3, %2 : vector<2x128xf32>
    %cst = arith.constant 1.000000e+00 : f32
    %9 = vector.broadcast %cst : f32 to vector<2x128xf32>
    %10 = arith.addf %8, %9 : vector<2x128xf32>
    %11 = vector.extract_strided_slice %10 {offsets = [0, 0], sizes = [1, 128], strides = [1, 1]} : vector<2x128xf32> to vector<1x128xf32>
    %12 = vector.extract_strided_slice %10 {offsets = [1, 0], sizes = [1, 128], strides = [1, 1]} : vector<2x128xf32> to vector<1x128xf32>
    %13 = arith.mulf %11, %12 : vector<1x128xf32>
    %14 = vector.broadcast %1 : vector<1x1xf32> to vector<1x128xf32>
    %15 = arith.mulf %13, %14 : vector<1x128xf32>
    %c10 = arith.constant 10 : index
    %c0_8 = arith.constant 0 : index
    %16 = vector.load %arg7[%c10, %c0_8] : memref<16x128xf32, #tpu.memory_space<vmem>>, vector<1x128xf32>
    tpu.vector_store %arg7[%c10, %c0_8], %15 {strides = array<i32>} : memref<16x128xf32, #tpu.memory_space<vmem>>, vector<1x128xf32>,
    %c4_9 = arith.constant 4 : index
    %c0_10 = arith.constant 0 : index
    %17 = vector.load %arg2[%c4_9, %c0_10] : memref<8x128xf32, #tpu.memory_space<vmem>>, vector<2x128xf32>
    %18 = arith.minimumf %2, %17 : vector<2x128xf32>
    %c6_11 = arith.constant 6 : index
    %c0_12 = arith.constant 0 : index
    %19 = vector.load %arg2[%c6_11, %c0_12] : memref<8x128xf32, #tpu.memory_space<vmem>>, vector<2x128xf32>
    %20 = arith.maximumf %3, %19 : vector<2x128xf32>
    %21 = arith.subf %20, %18 : vector<2x128xf32>
    %cst_13 = arith.constant 1.000000e+00 : f32
    %22 = vector.broadcast %cst_13 : f32 to vector<2x128xf32>
    %23 = arith.addf %21, %22 : vector<2x128xf32>
    %cst_14 = arith.constant 5.000000e-01 : f32
    %24 = vector.broadcast %cst_14 : f32 to vector<2x128xf32>
    %25 = arith.mulf %24, %10 : vector<2x128xf32>
    %26 = arith.addf %2, %25 : vector<2x128xf32>
    %cst_15 = arith.constant 5.000000e-01 : f32
    %27 = vector.broadcast %cst_15 : f32 to vector<2x128xf32>
    %28 = arith.mulf %27, %23 : vector<2x128xf32>
    %29 = arith.addf %18, %28 : vector<2x128xf32>
    %cst_16 = arith.constant 1.000000e+00 : f32
    %30 = vector.broadcast %cst_16 : f32 to vector<2x128xf32>
    %31 = arith.divf %30, %10 : vector<2x128xf32>
    %32 = arith.subf %29, %26 : vector<2x128xf32>
    %33 = arith.mulf %32, %31 : vector<2x128xf32>
    %c0_17 = arith.constant 0 : index
    %c0_18 = arith.constant 0 : index
    %34 = vector.load %arg7[%c0_17, %c0_18] : memref<16x128xf32, #tpu.memory_space<vmem>>, vector<2x128xf32>
    tpu.vector_store %arg7[%c0_17, %c0_18], %33 {strides = array<i32>} : memref<16x128xf32, #tpu.memory_space<vmem>>, vector<2x128xf32>,
    %35 = arith.mulf %23, %31 : vector<2x128xf32>
    %36 = math.log %35 : vector<2x128xf32>
    %c2_19 = arith.constant 2 : index
    %c0_20 = arith.constant 0 : index
    %37 = vector.load %arg7[%c2_19, %c0_20] : memref<16x128xf32, #tpu.memory_space<vmem>>, vector<2x128xf32>
    tpu.vector_store %arg7[%c2_19, %c0_20], %36 {strides = array<i32>} : memref<16x128xf32, #tpu.memory_space<vmem>>, vector<2x128xf32>,
    %38 = arith.subf %26, %29 : vector<2x128xf32>
    %cst_21 = arith.constant 1.000000e+00 : f32
    %39 = vector.broadcast %cst_21 : f32 to vector<2x128xf32>
    %40 = arith.divf %39, %23 : vector<2x128xf32>
    %41 = arith.mulf %38, %40 : vector<2x128xf32>
    %c4_22 = arith.constant 4 : index
    %c0_23 = arith.constant 0 : index
    %42 = vector.load %arg7[%c4_22, %c0_23] : memref<16x128xf32, #tpu.memory_space<vmem>>, vector<2x128xf32>
    tpu.vector_store %arg7[%c4_22, %c0_23], %41 {strides = array<i32>} : memref<16x128xf32, #tpu.memory_space<vmem>>, vector<2x128xf32>,
    %cst_24 = arith.constant 1.000000e+00 : f32
    %43 = vector.broadcast %cst_24 : f32 to vector<1x128xf32>
    %c11 = arith.constant 11 : index
    %c0_25 = arith.constant 0 : index
    %44 = vector.load %arg7[%c11, %c0_25] : memref<16x128xf32, #tpu.memory_space<vmem>>, vector<1x128xf32>
    tpu.vector_store %arg7[%c11, %c0_25], %43 {strides = array<i32>} : memref<16x128xf32, #tpu.memory_space<vmem>>, vector<1x128xf32>,
    %cst_26 = arith.constant 0.000000e+00 : f32
    %45 = vector.broadcast %cst_26 : f32 to vector<4x128xf32>
    %c12 = arith.constant 12 : index
    %c0_27 = arith.constant 0 : index
    %46 = vector.load %arg7[%c12, %c0_27] : memref<16x128xf32, #tpu.memory_space<vmem>>, vector<4x128xf32>
    tpu.vector_store %arg7[%c12, %c0_27], %45 {strides = array<i32>} : memref<16x128xf32, #tpu.memory_space<vmem>>, vector<4x128xf32>,
    %c0_28 = arith.constant 0 : index
    %c0_29 = arith.constant 0 : index
    %47 = vector.load %arg7[%c0_28, %c0_29] : memref<16x128xf32, #tpu.memory_space<vmem>>, vector<16x128xf32>
    %c0_30 = arith.constant 0 : index
    %c0_31 = arith.constant 0 : index
    %48 = vector.load %arg3[%c0_30, %c0_31] : memref<32x16xf32, #tpu.memory_space<vmem>>, vector<32x16xf32>
    %cst_32 = arith.constant dense<0.000000e+00> : vector<32x128xf32>
    %49 = tpu.matmul %48, %47, %cst_32 {dimension_numbers = #tpu.dot_dimension_numbers<[1], [0], [0], [1], [0, 0, 1, 1], [], []>} : vector<32x16xf32>, vector<16x128xf32>, vector<32x128xf32> -> vector<32x128xf32>
    %cst_33 = arith.constant 1.000000e-01 : f32
    %50 = vector.broadcast %cst_33 : f32 to vector<32x128xf32>
    %51 = arith.mulf %50, %49 : vector<32x128xf32>
    %52 = arith.maximumf %49, %51 : vector<32x128xf32>
    %c0_34 = arith.constant 0 : index
    %c0_35 = arith.constant 0 : index
    %53 = vector.load %arg4[%c0_34, %c0_35] : memref<32x32xf32, #tpu.memory_space<vmem>>, vector<32x32xf32>
    %cst_36 = arith.constant dense<0.000000e+00> : vector<128x32xf32>
    %54 = tpu.matmul %52, %53, %cst_36 {dimension_numbers = #tpu.dot_dimension_numbers<[0], [0], [1], [1], [0, 1, 1, 1], [], []>} : vector<32x128xf32>, vector<32x32xf32>, vector<128x32xf32> -> vector<128x32xf32>
    %c0_37 = arith.constant 0 : index
    %c0_38 = arith.constant 0 : index
    %55 = vector.load %arg5[%c0_37, %c0_38] : memref<1x32xf32, #tpu.memory_space<vmem>>, vector<1x32xf32>
    %56 = vector.broadcast %55 : vector<1x32xf32> to vector<128x32xf32>
    %57 = arith.addf %54, %56 : vector<128x32xf32>
    %cst_39 = arith.constant 1.000000e-01 : f32
    %58 = vector.broadcast %cst_39 : f32 to vector<128x32xf32>
    %59 = arith.mulf %58, %57 : vector<128x32xf32>
    %60 = arith.maximumf %57, %59 : vector<128x32xf32>
    %c0_40 = arith.constant 0 : index
    %c0_41 = arith.constant 0 : index
    %61 = vector.load %arg6[%c0_40, %c0_41] : memref<128x32xf32, #tpu.memory_space<vmem>>, vector<128x32xf32>
    tpu.vector_store %arg6[%c0_40, %c0_41], %60 {strides = array<i32>} : memref<128x32xf32, #tpu.memory_space<vmem>>, vector<128x32xf32>,
    return
  }
  func.func @transform_0(%arg0: i32) -> (i32, i32) {
    %c0_i32 = arith.constant 0 : i32
    %c0_i32_0 = arith.constant 0 : i32
    %c0_i32_1 = arith.constant 0 : i32
    return %c0_i32, %c0_i32_0 : i32, i32
  }
  func.func @transform_1(%arg0: i32) -> (i32, i32) {
    %c0_i32 = arith.constant 0 : i32
    %c0_i32_0 = arith.constant 0 : i32
    return %c0_i32, %arg0 : i32, i32
  }
  func.func @transform_2(%arg0: i32) -> (i32, i32) {
    %c0_i32 = arith.constant 0 : i32
    %c0_i32_0 = arith.constant 0 : i32
    %c0_i32_1 = arith.constant 0 : i32
    return %c0_i32, %c0_i32_0 : i32, i32
  }
  func.func @transform_3(%arg0: i32) -> (i32, i32) {
    %c0_i32 = arith.constant 0 : i32
    %c0_i32_0 = arith.constant 0 : i32
    %c0_i32_1 = arith.constant 0 : i32
    return %c0_i32, %c0_i32_0 : i32, i32
  }
  func.func @transform_4(%arg0: i32) -> (i32, i32) {
    %c0_i32 = arith.constant 0 : i32
    %c0_i32_0 = arith.constant 0 : i32
    %c0_i32_1 = arith.constant 0 : i32
    return %c0_i32, %c0_i32_0 : i32, i32
  }
  func.func @transform_5(%arg0: i32) -> (i32, i32) {
    %c0_i32 = arith.constant 0 : i32
    %c0_i32_0 = arith.constant 0 : i32
    return %arg0, %c0_i32 : i32, i32
  }
}

</mosaic_0001>

<llo_original>
// kernel: boxes_su_encode.1
$region0: #{boxes_su_encode.1}
  #allocation0 [shape = 'u32[]', space=smem, size = 0x4, offset = 0x4, fixed_abs, tag = 'smem constant byte address 0x4 - core index']
  #allocation1 [shape = 'u32[144,128]{1,0:T(1,128)}', space=vmem, size = 0x12000, scoped, tag = 'internal scratch']
  #allocation2 [shape = 'f32[16,128]{1,0:T(8,128)}', space=vmem, size = 0x2000, scoped, tag = 'scratch operand']
  %s0 = inlined_call_operand.vmem [shape: f32[8,1], index: 0, kind: input, shape index: {}]
  %s1 = inlined_call_operand.vmem [shape: f32[8,128], index: 1, kind: input, shape index: {}]
  %s2 = inlined_call_operand.vmem [shape: f32[32,16], index: 2, kind: input, shape index: {}]
  %s3 = inlined_call_operand.vmem [shape: f32[32,32], index: 3, kind: input, shape index: {}]
  %s4 = inlined_call_operand.vmem [shape: f32[1,32], index: 4, kind: input, shape index: {}]
  %s5 = inlined_call_operand.vmem [shape: f32[128,32], index: 5, kind: output, shape index: {}]
  %s6 = sld [smem:[#allocation0]]
  $region30: #{boxes_su_encode.1} parent=0
    _
  %s8 = ssub.s32 1, %s6
  %s9 = scalar_select 0, %s8, %s6
  // Predicated region
  $region2: #{boxes_su_encode.1} parent=0 // pred_check
    _
  $region3: #{boxes_su_encode.1} parent=0 // pred_check_branch
    %11 = sbr.rel (0) target = $region5
  $region4: #{boxes_su_encode.1} parent=0 // pred_region
    _
  $region5: #{boxes_su_encode.1} parent=0 // pred_fallthru
    _
  // Predicated region
  $region6: #{boxes_su_encode.1} parent=0 // pred_check
    _
  $region7: #{boxes_su_encode.1} parent=0 // pred_check_branch
    %13 = sbr.rel (0) target = $region9
  $region8: #{boxes_su_encode.1} parent=0 // pred_region
    _
  $region9: #{boxes_su_encode.1} parent=0 // pred_fallthru
    _
  // Predicated region
  $region10: #{boxes_su_encode.1} parent=0 // pred_check
    _
  $region11: #{boxes_su_encode.1} parent=0 // pred_check_branch
    %15 = sbr.rel (0) target = $region13
  $region12: #{boxes_su_encode.1} parent=0 // pred_region
    _
  $region13: #{boxes_su_encode.1} parent=0 // pred_fallthru
    _
  // Predicated region
  $region14: #{boxes_su_encode.1} parent=0 // pred_check
    _
  $region15: #{boxes_su_encode.1} parent=0 // pred_check_branch
    %17 = sbr.rel (0) target = $region17
  $region16: #{boxes_su_encode.1} parent=0 // pred_region
    _
  $region17: #{boxes_su_encode.1} parent=0 // pred_fallthru
    _
  // Predicated region
  $region18: #{boxes_su_encode.1} parent=0 // pred_check
    _
  $region19: #{boxes_su_encode.1} parent=0 // pred_check_branch
    %19 = sbr.rel (0) target = $region21
  $region20: #{boxes_su_encode.1} parent=0 // pred_region
    _
  $region21: #{boxes_su_encode.1} parent=0 // pred_fallthru
    _
  %v20 = vld [vmem:[%s0] sm:$0xf]
  %v21 = vld [vmem:[%s0 + $0x4] sm:$0x1]
  %v22 = vld [vmem:[%s1] sm:$0x3]
  %v23 = vld [vmem:[%s1 + $0x2] sm:$0x3]
  %v24 = vld [vmem:[%s1] sm:$0xf]
  %26 = vset.pattern.permute.xlu0 0
  %27 = vperm.xlu0 %26, %v20
  %v28 = vpop.permute.xlu0 %27
  %v30 = vmul.f32 %v24, %v28
  %31 = vst [vmem:[#allocation2 + $0x6] sm:$0xf] %v30
  %v32 = vsub.f32 %v23, %v22
  %v33 = vadd.f32 %v32, 1.0
  %v35 = vrot.slane %v33, 1
  %v37 = vmul.f32 %v33, %v35
  %39 = vset.pattern.permute.xlu0 0
  %40 = vperm.xlu0 %39, %v21
  %v41 = vpop.permute.xlu0 %40
  %v43 = vmul.f32 %v37, %v41
  %44 = vst [vmem:[#allocation2 + $0xa] sm:$0x1] %v43
  %v45 = vld [vmem:[%s1 + $0x4] sm:$0x3]
  %v46 = vmin.f32 %v22, %v45
  %v47 = vld [vmem:[%s1 + $0x6] sm:$0x3]
  %v48 = vmax.f32 %v23, %v47
  %v49 = vsub.f32 %v48, %v46
  %v50 = vadd.f32 %v49, 1.0
  %v51 = vmul.f32 %v33, 0.5
  %v52 = vadd.f32 %v22, %v51
  %v53 = vmul.f32 %v50, 0.5
  %v54 = vadd.f32 %v46, %v53
  %v55 = vrcp.pop %v33
  %v56 = vmul.f32 1.0, %v55
  %v57 = vsub.f32 %v54, %v52
  %v58 = vmul.f32 %v57, %v56
  %59 = vst [vmem:[#allocation2] sm:$0x3] %v58
  %v60 = vmul.f32 %v50, %v56
  %v61 = vlog2.pop %v60
  %v62 = vmul.f32 %v61, 0.6931472
  %63 = vst [vmem:[#allocation2 + $0x2] sm:$0x3] %v62
  %v64 = vsub.f32 %v52, %v54
  %v65 = vrcp.pop %v50
  %v66 = vmul.f32 1.0, %v65
  %v67 = vmul.f32 %v64, %v66
  %68 = vst [vmem:[#allocation2 + $0x4] sm:$0x3] %v67
  %69 = vst [vmem:[#allocation2 + $0xb] sm:$0x1] 1.0
  %70 = vst [vmem:[#allocation2 + $0xc] sm:$0xf] 0.0
  %v71 = vld [vmem:[#allocation2] sm:$0xff]
  %v72 = vld [vmem:[#allocation2 + $0x8] sm:$0xff]
  %v73 = vld [vmem:[%s2] sm:$0xff]
  %v74 = vld [vmem:[%s2 + $0x8] sm:$0xff]
  %v75 = vld [vmem:[%s2 + $0x10] sm:$0xff]
  %v76 = vld [vmem:[%s2 + $0x18] sm:$0xff]
  %vm77 = vcmask 130048
  %v79 = vsel %vm77, %v73, 0
  %v82 = vsel %vm77, %v74, 0
  %v85 = vsel %vm77, %v75, 0
  %v88 = vsel %vm77, %v76, 0
  %90 = vmatprep.subr.mxu0 0.0
  %91 = vmatpush1.msra.mxu0 0.0
  %92 = vmatprep.subr.mxu0 0.0
  %93 = vmatpush1.msra.mxu0 0.0
  %94 = vmatprep.subr.mxu0 0.0
  %95 = vmatpush1.msra.mxu0 0.0
  %96 = vmatprep.subr.mxu0 0.0
  %97 = vmatpush1.msra.mxu0 0.0
  %98 = vmatprep.subr.mxu0 0.0
  %99 = vmatpush1.msra.mxu0 0.0
  %100 = vmatprep.subr.mxu0 0.0
  %101 = vmatpush1.msra.mxu0 0.0
  %102 = vmatprep.subr.mxu0 0.0
  %103 = vmatpush1.msra.mxu0 0.0
  %104 = vmatprep.subr.mxu0 0.0
  %105 = vmatpush1.msra.mxu0 0.0
  %106 = vmatprep.subr.mxu0 0.0
  %107 = vmatpush1.msra.mxu0 0.0
  %108 = vmatprep.subr.mxu0 0.0
  %109 = vmatpush1.msra.mxu0 0.0
  %110 = vmatprep.subr.mxu0 0.0
  %111 = vmatpush1.msra.mxu0 0.0
  %112 = vmatprep.subr.mxu0 0.0
  %113 = vmatpush1.msra.mxu0 0.0
  %114 = vmatprep.subr.mxu0 0.0
  %115 = vmatpush1.msra.mxu0 0.0
  %116 = vmatprep.subr.mxu0 0.0
  %117 = vmatpush1.msra.mxu0 0.0
  %118 = vmatprep.subr.mxu0 0.0
  %119 = vmatpush1.msra.mxu0 %v72
  %120 = vmatprep.subr.mxu0 0.0
  %121 = vmatpush1.msra.mxu0 %v71
  %122 = vmatprep.subr.mxu0 0.0
  %123 = vmatpush2.msra.mxu0 0.0
  %124 = vmatprep.subr.mxu0 0.0
  %125 = vmatpush2.msra.mxu0 0.0
  %126 = vmatprep.subr.mxu0 0.0
  %127 = vmatpush2.msra.mxu0 0.0
  %128 = vmatprep.subr.mxu0 0.0
  %129 = vmatpush2.msra.mxu0 0.0
  %130 = vmatprep.subr.mxu0 0.0
  %131 = vmatpush2.msra.mxu0 0.0
  %132 = vmatprep.subr.mxu0 0.0
  %133 = vmatpush2.msra.mxu0 0.0
  %134 = vmatprep.subr.mxu0 0.0
  %135 = vmatpush2.msra.mxu0 0.0
  %136 = vmatprep.subr.mxu0 0.0
  %137 = vmatpush2.msra.mxu0 0.0
  %138 = vmatprep.subr.mxu0 0.0
  %139 = vmatpush2.msra.mxu0 0.0
  %140 = vmatprep.subr.mxu0 0.0
  %141 = vmatpush2.msra.mxu0 0.0
  %142 = vmatprep.subr.mxu0 0.0
  %143 = vmatpush2.msra.mxu0 0.0
  %144 = vmatprep.subr.mxu0 0.0
  %145 = vmatpush2.msra.mxu0 0.0
  %146 = vmatprep.subr.mxu0 0.0
  %147 = vmatpush2.msra.mxu0 0.0
  %148 = vmatprep.subr.mxu0 0.0
  %149 = vmatpush2.msra.mxu0 0.0
  %150 = vmatprep.subr.mxu0 0.0
  %151 = vmatpush2.msra.mxu0 0.0
  %152 = vmatprep.subr.mxu0 0.0
  %153 = vmatpush2.msra.mxu0 0.0
  %154 = vmatprep.mubr.f32.mxu0 0.0
  %155 = vmatmul.mubr.f32.gmra.mxu0 %v79
  %v156 = vpop.f32.mrf.mxu0
  %v157 = vadd.f32 0.0, %v156
  %v158 = vpop.f32.mrf.mxu0
  %159 = vmatprep.mubr.f32.mxu0 0.0
  %160 = vmatmul.mubr.f32.gmra.mxu0 %v82
  %v161 = vpop.f32.mrf.mxu0
  %v162 = vadd.f32 0.0, %v161
  %v163 = vpop.f32.mrf.mxu0
  %164 = vmatprep.mubr.f32.mxu0 0.0
  %165 = vmatmul.mubr.f32.gmra.mxu0 %v85
  %v166 = vpop.f32.mrf.mxu0
  %v167 = vadd.f32 0.0, %v166
  %v168 = vpop.f32.mrf.mxu0
  %169 = vmatprep.mubr.f32.mxu0 0.0
  %170 = vmatmul.mubr.f32.gmra.mxu0 %v88
  %v171 = vpop.f32.mrf.mxu0
  %v172 = vadd.f32 0.0, %v171
  %v173 = vpop.f32.mrf.mxu0
  %174 = vdwg.mxu0
  %v175 = vmul.f32 %v157, 0.1
  %v176 = vmul.f32 %v162, 0.1
  %v177 = vmul.f32 %v167, 0.1
  %v178 = vmul.f32 %v172, 0.1
  %v179 = vmax.f32 %v157, %v175
  %v180 = vmax.f32 %v162, %v176
  %v181 = vmax.f32 %v167, %v177
  %v182 = vmax.f32 %v172, %v178
  %v183 = vld [vmem:[%s3] sm:$0xff]
  %v184 = vld [vmem:[%s3 + $0x8] sm:$0xff]
  %v185 = vld [vmem:[%s3 + $0x10] sm:$0xff]
  %v186 = vld [vmem:[%s3 + $0x18] sm:$0xff]
  %v187 = vld [vmem:[%s4] sm:$0x1]
  %v189 = vlaneseq
  %v190 = vshrl.u32 %v189, 7
  %v191 = vsub.s32 0, %v190
  %v192 = vrot.slane %v187, %v191
  %194 = vxpose.xlu0.b32.start [1/16] %v179, 128
  %195 = vxpose.xlu0.b32.cont [2/16] %v180, 128
  %196 = vxpose.xlu0.b32.cont [3/16] %v181, 128
  %197 = vxpose.xlu0.b32.cont [4/16] %v182, 128
  %198 = vxpose.xlu0.b32.cont [5/16] 0.0, 128
  %199 = vxpose.xlu0.b32.cont [6/16] 0.0, 128
  %200 = vxpose.xlu0.b32.cont [7/16] 0.0, 128
  %201 = vxpose.xlu0.b32.cont [8/16] 0.0, 128
  %202 = vxpose.xlu0.b32.cont [9/16] 0.0, 128
  %203 = vxpose.xlu0.b32.cont [10/16] 0.0, 128
  %204 = vxpose.xlu0.b32.cont [11/16] 0.0, 128
  %205 = vxpose.xlu0.b32.cont [12/16] 0.0, 128
  %206 = vxpose.xlu0.b32.cont [13/16] 0.0, 128
  %207 = vxpose.xlu0.b32.cont [14/16] 0.0, 128
  %208 = vxpose.xlu0.b32.cont [15/16] 0.0, 128
  %209 = vxpose.xlu0.b32.end [16/16] 0.0, 128
  %v210 = vpop.trf.xlu0
  %v211 = vpop.trf.xlu0
  %v212 = vpop.trf.xlu0
  %v213 = vpop.trf.xlu0
  %v214 = vpop.trf.xlu0
  %v215 = vpop.trf.xlu0
  %v216 = vpop.trf.xlu0
  %v217 = vpop.trf.xlu0
  %v218 = vpop.trf.xlu0
  %v219 = vpop.trf.xlu0
  %v220 = vpop.trf.xlu0
  %v221 = vpop.trf.xlu0
  %v222 = vpop.trf.xlu0
  %v223 = vpop.trf.xlu0
  %v224 = vpop.trf.xlu0
  %v225 = vpop.trf.xlu0
  %vm226 = vcmask 261120
  %v228 = vsel %vm226, %v210, 0
  %v231 = vsel %vm226, %v211, 0
  %v234 = vsel %vm226, %v212, 0
  %v237 = vsel %vm226, %v213, 0
  %v240 = vsel %vm226, %v214, 0
  %v243 = vsel %vm226, %v215, 0
  %v246 = vsel %vm226, %v216, 0
  %v249 = vsel %vm226, %v217, 0
  %v252 = vsel %vm226, %v218, 0
  %v255 = vsel %vm226, %v219, 0
  %v258 = vsel %vm226, %v220, 0
  %v261 = vsel %vm226, %v221, 0
  %v264 = vsel %vm226, %v222, 0
  %v267 = vsel %vm226, %v223, 0
  %v270 = vsel %vm226, %v224, 0
  %v273 = vsel %vm226, %v225, 0
  %275 = vmatprep.subr.mxu0 0.0
  %276 = vmatpush1.msra.mxu0 0.0
  %277 = vmatprep.subr.mxu0 0.0
  %278 = vmatpush1.msra.mxu0 0.0
  %279 = vmatprep.subr.mxu0 0.0
  %280 = vmatpush1.msra.mxu0 0.0
  %281 = vmatprep.subr.mxu0 0.0
  %282 = vmatpush1.msra.mxu0 0.0
  %283 = vmatprep.subr.mxu0 0.0
  %284 = vmatpush1.msra.mxu0 0.0
  %285 = vmatprep.subr.mxu0 0.0
  %286 = vmatpush1.msra.mxu0 0.0
  %287 = vmatprep.subr.mxu0 0.0
  %288 = vmatpush1.msra.mxu0 0.0
  %289 = vmatprep.subr.mxu0 0.0
  %290 = vmatpush1.msra.mxu0 0.0
  %291 = vmatprep.subr.mxu0 0.0
  %292 = vmatpush1.msra.mxu0 0.0
  %293 = vmatprep.subr.mxu0 0.0
  %294 = vmatpush1.msra.mxu0 0.0
  %295 = vmatprep.subr.mxu0 0.0
  %296 = vmatpush1.msra.mxu0 0.0
  %297 = vmatprep.subr.mxu0 0.0
  %298 = vmatpush1.msra.mxu0 0.0
  %299 = vmatprep.subr.mxu0 0.0
  %300 = vmatpush1.msra.mxu0 %v186
  %301 = vmatprep.subr.mxu0 0.0
  %302 = vmatpush1.msra.mxu0 %v185
  %303 = vmatprep.subr.mxu0 0.0
  %304 = vmatpush1.msra.mxu0 %v184
  %305 = vmatprep.subr.mxu0 0.0
  %306 = vmatpush1.msra.mxu0 %v183
  %307 = vmatprep.subr.mxu0 0.0
  %308 = vmatpush2.msra.mxu0 0.0
  %309 = vmatprep.subr.mxu0 0.0
  %310 = vmatpush2.msra.mxu0 0.0
  %311 = vmatprep.subr.mxu0 0.0
  %312 = vmatpush2.msra.mxu0 0.0
  %313 = vmatprep.subr.mxu0 0.0
  %314 = vmatpush2.msra.mxu0 0.0
  %315 = vmatprep.subr.mxu0 0.0
  %316 = vmatpush2.msra.mxu0 0.0
  %317 = vmatprep.subr.mxu0 0.0
  %318 = vmatpush2.msra.mxu0 0.0
  %319 = vmatprep.subr.mxu0 0.0
  %320 = vmatpush2.msra.mxu0 0.0
  %321 = vmatprep.subr.mxu0 0.0
  %322 = vmatpush2.msra.mxu0 0.0
  %323 = vmatprep.subr.mxu0 0.0
  %324 = vmatpush2.msra.mxu0 0.0
  %325 = vmatprep.subr.mxu0 0.0
  %326 = vmatpush2.msra.mxu0 0.0
  %327 = vmatprep.subr.mxu0 0.0
  %328 = vmatpush2.msra.mxu0 0.0
  %329 = vmatprep.subr.mxu0 0.0
  %330 = vmatpush2.msra.mxu0 0.0
  %331 = vmatprep.subr.mxu0 0.0
  %332 = vmatpush2.msra.mxu0 0.0
  %333 = vmatprep.subr.mxu0 0.0
  %334 = vmatpush2.msra.mxu0 0.0
  %335 = vmatprep.subr.mxu0 0.0
  %336 = vmatpush2.msra.mxu0 0.0
  %337 = vmatprep.subr.mxu0 0.0
  %338 = vmatpush2.msra.mxu0 0.0
  %339 = vmatprep.mubr.f32.mxu0 0.0
  %340 = vmatmul.mubr.f32.gmra.mxu0 %v228
  %v341 = vpop.f32.mrf.mxu0
  %v342 = vadd.f32 %v192, %v341
  %v343 = vpop.f32.mrf.mxu0
  %344 = vmatprep.mubr.f32.mxu0 0.0
  %345 = vmatmul.mubr.f32.gmra.mxu0 %v231
  %v346 = vpop.f32.mrf.mxu0
  %v347 = vadd.f32 %v192, %v346
  %v348 = vpop.f32.mrf.mxu0
  %349 = vmatprep.mubr.f32.mxu0 0.0
  %350 = vmatmul.mubr.f32.gmra.mxu0 %v234
  %v351 = vpop.f32.mrf.mxu0
  %v352 = vadd.f32 %v192, %v351
  %v353 = vpop.f32.mrf.mxu0
  %354 = vmatprep.mubr.f32.mxu0 0.0
  %355 = vmatmul.mubr.f32.gmra.mxu0 %v237
  %v356 = vpop.f32.mrf.mxu0
  %v357 = vadd.f32 %v192, %v356
  %v358 = vpop.f32.mrf.mxu0
  %359 = vmatprep.mubr.f32.mxu0 0.0
  %360 = vmatmul.mubr.f32.gmra.mxu0 %v240
  %v361 = vpop.f32.mrf.mxu0
  %v362 = vadd.f32 %v192, %v361
  %v363 = vpop.f32.mrf.mxu0
  %364 = vmatprep.mubr.f32.mxu0 0.0
  %365 = vmatmul.mubr.f32.gmra.mxu0 %v243
  %v366 = vpop.f32.mrf.mxu0
  %v367 = vadd.f32 %v192, %v366
  %v368 = vpop.f32.mrf.mxu0
  %369 = vmatprep.mubr.f32.mxu0 0.0
  %370 = vmatmul.mubr.f32.gmra.mxu0 %v246
  %v371 = vpop.f32.mrf.mxu0
  %v372 = vadd.f32 %v192, %v371
  %v373 = vpop.f32.mrf.mxu0
  %374 = vmatprep.mubr.f32.mxu0 0.0
  %375 = vmatmul.mubr.f32.gmra.mxu0 %v249
  %v376 = vpop.f32.mrf.mxu0
  %v377 = vadd.f32 %v192, %v376
  %v378 = vpop.f32.mrf.mxu0
  %379 = vmatprep.mubr.f32.mxu0 0.0
  %380 = vmatmul.mubr.f32.gmra.mxu0 %v252
  %v381 = vpop.f32.mrf.mxu0
  %v382 = vadd.f32 %v192, %v381
  %v383 = vpop.f32.mrf.mxu0
  %384 = vmatprep.mubr.f32.mxu0 0.0
  %385 = vmatmul.mubr.f32.gmra.mxu0 %v255
  %v386 = vpop.f32.mrf.mxu0
  %v387 = vadd.f32 %v192, %v386
  %v388 = vpop.f32.mrf.mxu0
  %389 = vmatprep.mubr.f32.mxu0 0.0
  %390 = vmatmul.mubr.f32.gmra.mxu0 %v258
  %v391 = vpop.f32.mrf.mxu0
  %v392 = vadd.f32 %v192, %v391
  %v393 = vpop.f32.mrf.mxu0
  %394 = vmatprep.mubr.f32.mxu0 0.0
  %395 = vmatmul.mubr.f32.gmra.mxu0 %v261
  %v396 = vpop.f32.mrf.mxu0
  %v397 = vadd.f32 %v192, %v396
  %v398 = vpop.f32.mrf.mxu0
  %399 = vmatprep.mubr.f32.mxu0 0.0
  %400 = vmatmul.mubr.f32.gmra.mxu0 %v264
  %v401 = vpop.f32.mrf.mxu0
  %v402 = vadd.f32 %v192, %v401
  %v403 = vpop.f32.mrf.mxu0
  %404 = vmatprep.mubr.f32.mxu0 0.0
  %405 = vmatmul.mubr.f32.gmra.mxu0 %v267
  %v406 = vpop.f32.mrf.mxu0
  %v407 = vadd.f32 %v192, %v406
  %v408 = vpop.f32.mrf.mxu0
  %409 = vmatprep.mubr.f32.mxu0 0.0
  %410 = vmatmul.mubr.f32.gmra.mxu0 %v270
  %v411 = vpop.f32.mrf.mxu0
  %v412 = vadd.f32 %v192, %v411
  %v413 = vpop.f32.mrf.mxu0
  %414 = vmatprep.mubr.f32.mxu0 0.0
  %415 = vmatmul.mubr.f32.gmra.mxu0 %v273
  %v416 = vpop.f32.mrf.mxu0
  %v417 = vadd.f32 %v192, %v416
  %v418 = vpop.f32.mrf.mxu0
  %419 = vdwg.mxu0
  %v420 = vmul.f32 %v342, 0.1
  %v421 = vmul.f32 %v347, 0.1
  %v422 = vmul.f32 %v352, 0.1
  %v423 = vmul.f32 %v357, 0.1
  %v424 = vmul.f32 %v362, 0.1
  %v425 = vmul.f32 %v367, 0.1
  %v426 = vmul.f32 %v372, 0.1
  %v427 = vmul.f32 %v377, 0.1
  %v428 = vmul.f32 %v382, 0.1
  %v429 = vmul.f32 %v387, 0.1
  %v430 = vmul.f32 %v392, 0.1
  %v431 = vmul.f32 %v397, 0.1
  %v432 = vmul.f32 %v402, 0.1
  %v433 = vmul.f32 %v407, 0.1
  %v434 = vmul.f32 %v412, 0.1
  %v435 = vmul.f32 %v417, 0.1
  %v436 = vmax.f32 %v342, %v420
  %v437 = vmax.f32 %v347, %v421
  %v438 = vmax.f32 %v352, %v422
  %v439 = vmax.f32 %v357, %v423
  %v440 = vmax.f32 %v362, %v424
  %v441 = vmax.f32 %v367, %v425
  %v442 = vmax.f32 %v372, %v426
  %v443 = vmax.f32 %v377, %v427
  %v444 = vmax.f32 %v382, %v428
  %v445 = vmax.f32 %v387, %v429
  %v446 = vmax.f32 %v392, %v430
  %v447 = vmax.f32 %v397, %v431
  %v448 = vmax.f32 %v402, %v432
  %v449 = vmax.f32 %v407, %v433
  %v450 = vmax.f32 %v412, %v434
  %v451 = vmax.f32 %v417, %v435
  %452 = vst.msk [vmem:[%s5] sm:$0xff] %vm226, %v436
  %453 = vst.msk [vmem:[%s5 + $0x8] sm:$0xff] %vm226, %v437
  %454 = vst.msk [vmem:[%s5 + $0x10] sm:$0xff] %vm226, %v438
  %455 = vst.msk [vmem:[%s5 + $0x18] sm:$0xff] %vm226, %v439
  %456 = vst.msk [vmem:[%s5 + $0x20] sm:$0xff] %vm226, %v440
  %457 = vst.msk [vmem:[%s5 + $0x28] sm:$0xff] %vm226, %v441
  %458 = vst.msk [vmem:[%s5 + $0x30] sm:$0xff] %vm226, %v442
  %459 = vst.msk [vmem:[%s5 + $0x38] sm:$0xff] %vm226, %v443
  %460 = vst.msk [vmem:[%s5 + $0x40] sm:$0xff] %vm226, %v444
  %461 = vst.msk [vmem:[%s5 + $0x48] sm:$0xff] %vm226, %v445
  %462 = vst.msk [vmem:[%s5 + $0x50] sm:$0xff] %vm226, %v446
  %463 = vst.msk [vmem:[%s5 + $0x58] sm:$0xff] %vm226, %v447
  %464 = vst.msk [vmem:[%s5 + $0x60] sm:$0xff] %vm226, %v448
  %465 = vst.msk [vmem:[%s5 + $0x68] sm:$0xff] %vm226, %v449
  %466 = vst.msk [vmem:[%s5 + $0x70] sm:$0xff] %vm226, %v450
  %467 = vst.msk [vmem:[%s5 + $0x78] sm:$0xff] %vm226, %v451
  // Predicated region
  $region22: #{boxes_su_encode.1} parent=0 // pred_check
    _
  $region23: #{boxes_su_encode.1} parent=0 // pred_check_branch
    %469 = sbr.rel (0) target = $region25
  $region24: #{boxes_su_encode.1} parent=0 // pred_region
    _
  $region25: #{boxes_su_encode.1} parent=0 // pred_fallthru
    _
  // Predicated region
  $region26: #{boxes_su_encode.1} parent=0 // pred_check
    _
  $region27: #{boxes_su_encode.1} parent=0 // pred_check_branch
    %471 = sbr.rel (0) target = $region29
  $region28: #{boxes_su_encode.1} parent=0 // pred_region
    _
  $region29: #{boxes_su_encode.1} parent=0 // pred_fallthru
    _

</llo_original>
